<compile_context>
chip_gen: v7x
topology: tpu7x:2x2x1
jax: 0.10.0
libtpu: 0.0.40
codegen_flags: <defaults>
</compile_context>

<pallas_src>
import functools

import jax
import jax.numpy as jnp
from jax.experimental import pallas as pl
from jax.experimental.pallas import tpu as pltpu


def _min_value(dtype):
    """Identity element for max in this dtype."""
    dtype = jnp.dtype(dtype)
    if jnp.issubdtype(dtype, jnp.floating):
        return float("-inf")
    return int(jnp.iinfo(dtype).min)


def _vmem_capacity_bytes():
    """Best-effort query of per-core VMEM capacity; conservative fallback."""
    try:
        info = pltpu.get_tpu_info()
        for attr in ("vmem_capacity_bytes", "vmem_bytes", "vmem_capacity"):
            v = getattr(info, attr, None)
            if v:
                return int(v)
    except Exception:
        pass
    return 64 << 20  # assume the smallest (v7x-style) VMEM if query fails


# ---------------------------------------------------------------------------
# Kernels
# ---------------------------------------------------------------------------

def _global_max_pool_small_kernel(x_ref, o_ref):
    # Whole (B, L, C) input resident in VMEM: single reduction, no grid.
    o_ref[...] = jnp.max(x_ref[...], axis=1)


def _global_max_pool_tile_kernel(x_ref, o_ref, *, L, tl, num_l, needs_mask,
                                 init_val):
    # Grid = (B [parallel], C tiles [parallel], L tiles [arbitrary/reduction]).
    # x_ref: (1, tl, tc) contiguous input tile; o_ref: (1, 1, tc) resident acc.
    l = pl.program_id(2)

    @pl.when(l == 0)
    def _():
        o_ref[...] = jnp.full(o_ref.shape, init_val, o_ref.dtype)

    x = x_ref[...]

    if needs_mask:
        # Only the ragged last L tile pays for the mask; all other tiles run
        # the plain sublane-reduce + elementwise max.
        @pl.when(l == num_l - 1)
        def _():
            valid = L - l * tl
            row = jax.lax.broadcasted_iota(jnp.int32, (1, tl, 1), 1)
            xm = jnp.where(row < valid, x, jnp.asarray(init_val, x.dtype))
            o_ref[...] = jnp.maximum(o_ref[...],
                                     jnp.max(xm, axis=1, keepdims=True))

        @pl.when(l != num_l - 1)
        def _():
            o_ref[...] = jnp.maximum(o_ref[...],
                                     jnp.max(x, axis=1, keepdims=True))
    else:
        o_ref[...] = jnp.maximum(o_ref[...],
                                 jnp.max(x, axis=1, keepdims=True))


# ---------------------------------------------------------------------------
# Wrapper
# ---------------------------------------------------------------------------

def global_max_pool_1d(x, *, target_block_bytes=None,
                       small_path_max_bytes=4 * 1024 * 1024):
    """x: (B, L, C) array. Returns (B, C) = max over the sequence axis L."""
    B, L, C = x.shape
    dtype = x.dtype
    itemsize = jnp.dtype(dtype).itemsize

    # ---- Small-problem fast path: one gridless block, no accumulator. ----
    # Cutoff is fixed and well below the default scoped-VMEM limit on every
    # generation (16 MiB on v5e), independent of the tiled-path block target.
    total_bytes = B * L * C * itemsize
    if total_bytes <= small_path_max_bytes:
        return pl.pallas_call(
            _global_max_pool_small_kernel,
            out_shape=jax.ShapeDtypeStruct((B, C), dtype),
            in_specs=[pl.BlockSpec(memory_space=pltpu.MemorySpace.VMEM)],
            out_specs=pl.BlockSpec(memory_space=pltpu.MemorySpace.VMEM),
        )(x)

    # ---- Generation-aware block-size targets (HBM-BW-bound reduction). ----
    vmem_cap = _vmem_capacity_bytes()
    if vmem_cap <= (64 << 20):            # v7x-class: 64 MiB VMEM / core
        auto_target, tile_cap = 10 << 20, 12 << 20
    else:                                 # v5e/v6e: 128 MiB VMEM
        auto_target, tile_cap = 16 << 20, 24 << 20
    if target_block_bytes is None:
        target_block_bytes = auto_target
    target_block_bytes = int(min(target_block_bytes, tile_cap))

    # ---- C (lane) tiling. Blocks are (1, tl, tc); keeping tc == C makes ----
    # ---- each block one fully contiguous HBM run, so only split C when  ----
    # ---- B == 1 (to give the parallel axis >= 2 steps on v7x) or when   ----
    # ---- even a minimum-height tile would exceed the per-tile byte cap. ----
    tc = C
    if B == 1 and C % 256 == 0:
        tc = C // 2
    # Dtype-aware sublane multiple: 8 (f32), 16 (bf16), 32 (int8/fp8).
    sub = 8 * max(1, 4 // itemsize)
    while tc % 256 == 0 and sub * tc * itemsize > tile_cap:
        tc //= 2
    num_c = C // tc

    # ---- L (sublane) tiling: largest sublane-aligned tile near target. ----
    tl = (target_block_bytes // max(1, tc * itemsize)) // sub * sub
    tl = max(tl, sub)
    if tl >= L:
        tl = L  # full-dim block: exempt from the sublane-multiple constraint
    num_l = pl.cdiv(L, tl)
    needs_mask = (L % tl) != 0
    init_val = _min_value(dtype)

    # ---- VMEM budget: derived from the real double-buffered requirement ----
    # ---- (tile bytes were capped above; never clamp below the need).    ----
    in_block_bytes = tl * tc * itemsize
    out_block_bytes = tc * itemsize
    vmem_limit = 2 * in_block_bytes + 2 * out_block_bytes + (2 << 20)
    vmem_limit = int(max(vmem_limit, 16 << 20))

    kernel = functools.partial(
        _global_max_pool_tile_kernel,
        L=L, tl=tl, num_l=num_l, needs_mask=needs_mask, init_val=init_val)

    # Output kept as (B, 1, C) inside the kernel so the per-step block
    # (1, 1, tc) is lane-dense and its trailing dims match the array dims;
    # the squeeze below is a free metadata reshape.
    out3 = pl.pallas_call(
        kernel,
        out_shape=jax.ShapeDtypeStruct((B, 1, C), dtype),
        grid_spec=pltpu.PrefetchScalarGridSpec(
            num_scalar_prefetch=0,
            grid=(B, num_c, num_l),
            in_specs=[pl.BlockSpec((1, tl, tc), lambda b, c, l: (b, l, c))],
            # Same output block across the L axis -> resident accumulator.
            out_specs=pl.BlockSpec((1, 1, tc), lambda b, c, l: (b, 0, c)),
        ),
        compiler_params=pltpu.CompilerParams(
            dimension_semantics=("parallel", "parallel", "arbitrary"),
            vmem_limit_bytes=vmem_limit,
        ),
    )(x)
    return jnp.squeeze(out3, axis=1)


def global_max_pool_1d_ref(x):
    # Pure-JAX reference matching the PyTorch module's forward.
    return jnp.max(x, axis=1)


if __name__ == "__main__":
    key = jax.random.PRNGKey(0)
    k1, k2, k3 = jax.random.split(key, 3)

    # Small case (B, L, C): exercises the gridless fast path.
    B, L, C = 2, 16, 128
    x_small = jax.random.normal(k1, (B, L, C), dtype=jnp.float32)
    out_small = jax.block_until_ready(global_max_pool_1d(x_small))
    ref_small = global_max_pool_1d_ref(x_small)
    assert out_small.shape == (B, C), out_small.shape
    assert jnp.allclose(out_small, ref_small), "small-path mismatch"

    # Tiled path, B >= 2 (parallel over batch), bf16, ragged L tail.
    # Force tiny blocks / disable the small path so the grid path is taken
    # at this modest test size.
    B2, L2, C2 = 2, 200, 256
    x_big = jax.random.normal(k2, (B2, L2, C2), dtype=jnp.bfloat16)
    out_big = jax.block_until_ready(global_max_pool_1d(
        x_big, target_block_bytes=64 * 1024, small_path_max_bytes=0))
    ref_big = global_max_pool_1d_ref(x_big)
    assert out_big.shape == (B2, C2), out_big.shape
    assert jnp.array_equal(out_big, ref_big), "tiled-path (B>=2) mismatch"

    # Tiled path, B == 1: C is split into two 128-lane tiles so the parallel
    # axis still has >= 2 steps; also exercises the ragged-tail mask in f32.
    B3, L3, C3 = 1, 200, 256
    x_one = jax.random.normal(k3, (B3, L3, C3), dtype=jnp.float32)
    out_one = jax.block_until_ready(global_max_pool_1d(
        x_one, target_block_bytes=64 * 1024, small_path_max_bytes=0))
    ref_one = global_max_pool_1d_ref(x_one)
    assert out_one.shape == (B3, C3), out_one.shape
    assert jnp.allclose(out_one, ref_one), "tiled-path (B==1) mismatch"

    print("KERNEL_OK")
</pallas_src>

<mosaic_0001>
module attributes {stable_mosaic.version = 11 : i64} {
  func.func @_global_max_pool_small_kernel(%arg0: memref<2x16x128xf32, #tpu.memory_space<vmem>>, %arg1: memref<2x128xf32, #tpu.memory_space<vmem>>) attributes {dimension_semantics = [], scalar_prefetch = 0 : i64, scratch_operands = 0 : i64, tpu.core_type = #tpu.core_type<tc>} {
    %c0 = arith.constant 0 : index
    %c0_0 = arith.constant 0 : index
    %c0_1 = arith.constant 0 : index
    %0 = vector.load %arg0[%c0, %c0_0, %c0_1] : memref<2x16x128xf32, #tpu.memory_space<vmem>>, vector<2x16x128xf32>
    %cst = arith.constant dense<0xFF800000> : vector<2x128xf32>
    %1 = vector.multi_reduction <maximumf>, %0, %cst [1] : vector<2x16x128xf32> to vector<2x128xf32>
    %c0_2 = arith.constant 0 : index
    %c0_3 = arith.constant 0 : index
    %2 = vector.load %arg1[%c0_2, %c0_3] : memref<2x128xf32, #tpu.memory_space<vmem>>, vector<2x128xf32>
    tpu.vector_store %arg1[%c0_2, %c0_3], %1 {strides = array<i32>} : memref<2x128xf32, #tpu.memory_space<vmem>>, vector<2x128xf32>,
    return
  }
}

</mosaic_0001>

<llo_original>
// kernel: tpu_custom_call.1
$region0: #{tpu_custom_call.1}
  #allocation0 [shape = 'u32[]', space=smem, size = 0x4, offset = 0x4, fixed_abs, tag = 'smem constant byte address 0x4 - core index']
  #allocation1 [shape = 'u32[144,128]{1,0:T(1,128)}', space=vmem, size = 0x12000, scoped, tag = 'internal scratch']
  %s0 = inlined_call_operand.hbm [shape: f32[2,16,128], index: 0, kind: input, shape index: {}]
  %s1 = inlined_call_operand.hbm [shape: f32[2,128], index: 1, kind: output, shape index: {}]
  %s2 = sld [smem:[#allocation0]]
  $region18: #{tpu_custom_call.1} parent=0
    _
  %s4 = ssub.s32 1, %s2
  %s5 = scalar_select 0, %s4, %s2
  $region1: #{tpu_custom_call.1} parent=0
    #allocation2 [shape = 'u8[16384]{0}', space=vmem, size = 0x4000, scoped, tag = 'input window, operand 0, single buffered']
    #allocation3 [shape = 's32[1]{0}', space=sflag, size = 0x4, scoped, tag = 'scoped memory for tpu_custom_call.1']
    #allocation4 [shape = 's32[1]{0}', space=sflag, size = 0x4, scoped, tag = 'scoped memory for tpu_custom_call.1']
    #allocation5 [shape = 'u8[1024]{0}', space=vmem, size = 0x400, scoped, tag = 'output window, operand 0, single buffered']
    %6 = vsyncpa [#allocation3], 0
    %7 = vsyncpa [#allocation4], 0
    // Predicated region
    $region2: #{tpu_custom_call.1} parent=1 // pred_check
      _
    $region3: #{tpu_custom_call.1} parent=1 // pred_check_branch
      %9 = sbr.rel (0) target = $region5
    $region4: #{tpu_custom_call.1} parent=1 // pred_region
      %s11 = ssub.s32 512, 512
      %12 = vsyncadd [#allocation3], %s11
      %s13 = sshll.u32 [#allocation2], 4
      %s14 = int_to_ptr.vmem [resolvable:$true] %s13
      %19 = dma.hbm_to_vmem [thread:$0]  %s0, 512, %s14, [#allocation3], 128, 128, 8
    $region5: #{tpu_custom_call.1} parent=1 // pred_fallthru
      _
    // Predicated region
    $region6: #{tpu_custom_call.1} parent=1 // pred_check
      _
    $region7: #{tpu_custom_call.1} parent=1 // pred_check_branch
      %21 = sbr.rel (0) target = $region9
    $region8: #{tpu_custom_call.1} parent=1 // pred_region
      %22 = dma.done [#allocation3], 512
    $region9: #{tpu_custom_call.1} parent=1 // pred_fallthru
      _
    %v23 = vld [vmem:[#allocation2] sm:$0xff]
    %v24 = vld [vmem:[#allocation2 + $0x8] sm:$0xff]
    %v25 = vld [vmem:[#allocation2 + $0x10] sm:$0xff]
    %v26 = vld [vmem:[#allocation2 + $0x18] sm:$0xff]
    %v27 = vmax.f32 %v23, %v24
    %v28 = vrot.slane %v27, 4
    %v29 = vmax.f32 %v27, %v28
    %v30 = vrot.slane %v29, 2
    %v31 = vmax.f32 %v29, %v30
    %v32 = vrot.slane %v31, 1
    %v33 = vmax.f32 %v31, %v32
    %v34 = vmax.f32 %v25, %v26
    %v35 = vrot.slane %v34, 4
    %v36 = vmax.f32 %v34, %v35
    %v37 = vrot.slane %v36, 2
    %v38 = vmax.f32 %v36, %v37
    %v39 = vrot.slane %v38, 1
    %v40 = vmax.f32 %v38, %v39
    %vm43 = vcmask 1041409
    %v44 = vsel %vm43, %v40, %v33
    %46 = vst [vmem:[#allocation5] sm:$0x3] %v44
    // Predicated region
    $region10: #{tpu_custom_call.1} parent=1 // pred_check
      _
    $region11: #{tpu_custom_call.1} parent=1 // pred_check_branch
      %48 = sbr.rel (0) target = $region13
    $region12: #{tpu_custom_call.1} parent=1 // pred_region
      %s50 = ssub.s32 32, 32
      %51 = vsyncadd [#allocation4], %s50
      %s53 = sshll.u32 [#allocation5], 4
      %s54 = int_to_ptr.vmem [resolvable:$true] %s53
      %56 = dma.vmem_to_hbm [thread:$0]  %s54, 32, %s1, [#allocation4]
    $region13: #{tpu_custom_call.1} parent=1 // pred_fallthru
      _
    // Predicated region
    $region14: #{tpu_custom_call.1} parent=1 // pred_check
      _
    $region15: #{tpu_custom_call.1} parent=1 // pred_check_branch
      %58 = sbr.rel (0) target = $region17
    $region16: #{tpu_custom_call.1} parent=1 // pred_region
      %59 = dma.done [#allocation4], 32
    $region17: #{tpu_custom_call.1} parent=1 // pred_fallthru
      _
    %60 = vsyncpa [#allocation3], 1
    %61 = vsyncpa [#allocation4], 1

</llo_original>
